<compile_context>
chip_gen: v6e
topology: v6e:2x2x1
jax: 0.10.0
libtpu: 0.0.40
codegen_flags: <defaults>
</compile_context>

<pallas_src>
import numpy as np
import jax
import jax.numpy as jnp
from jax.experimental import pallas as pl
from jax.experimental.pallas import tpu as pltpu


def _logit_head_kernel(x_ref, w_ref, s_ref, b_ref, o_ref):
    # x_ref: (block_m, Dp)  compute dtype (bf16)
    # w_ref: (Dp, block_n)  compute dtype (bf16), pre-transposed head weight
    # s_ref: (block_m, 1)   f32 = exp(logit_scale) / max(||x_row||, 1e-12)
    # b_ref: (1, block_n)   f32 = bias * exp(logit_scale)
    # o_ref: (block_m, block_n)
    y = jnp.dot(x_ref[...], w_ref[...], preferred_element_type=jnp.float32)
    o_ref[...] = (y * s_ref[...] + b_ref[...]).astype(o_ref.dtype)


def _round_up(x, m):
    return (x + m - 1) // m * m


def logit_head(x, weight, bias, logit_scale, *, block_n=512,
               compute_dtype=jnp.bfloat16,
               vmem_budget_bytes=44 * 1024 * 1024):
    """x: (N, D); weight: (C, D); bias: (C,); logit_scale: python float.

    Returns (N, C) logits = exp(logit_scale) * (normalize(x, dim=1) @ weight.T + bias).
    """
    N, D = x.shape
    C, Dw = weight.shape
    assert Dw == D
    out_dtype = x.dtype
    out_bytes = jnp.dtype(out_dtype).itemsize
    cd_bytes = jnp.dtype(compute_dtype).itemsize

    # --- block sizing / alignment -------------------------------------------------
    sub = 16 if compute_dtype == jnp.bfloat16 else 8     # sublane packing of x rows
    Dp = _round_up(D, 128)                               # lane-aligned contraction dim
    Cp0 = _round_up(C, 128)                              # lane-dense class axis
    block_n = max(128, min(_round_up(block_n, 128), Cp0))

    # Keep the double-buffered weight tile within ~half the VMEM budget.
    # TODO(synk): for very large D (Dp*block_n bf16 still too big) add a K grid axis
    # over D with a VMEM f32 accumulator + pl.when init/finalize.
    while block_n > 128 and 2 * Dp * block_n * cd_bytes > vmem_budget_bytes // 2:
        block_n = max(128, _round_up(block_n // 2, 128))

    # Size block_m so the weight is streamed from HBM exactly once when it fits.
    fixed = 2 * Dp * block_n * cd_bytes + 2 * 8 * block_n * 4       # weight + bias bufs
    per_row = 2 * (Dp * cd_bytes + block_n * out_bytes + 128 * 4)   # x + out + row scale
    max_bm = max(sub, ((vmem_budget_bytes - fixed) // per_row) // sub * sub)
    block_m = max(sub, min(_round_up(N, sub), max_bm))
    Np = _round_up(N, block_m)
    Cp = _round_up(C, block_n)
    grid_m, grid_n = Np // block_m, Cp // block_n

    # v7x megacore: make sure at least one parallel axis has >= 2 blocks.
    if grid_m == 1 and grid_n == 1:
        if Cp0 >= 256:
            block_n = _round_up(-(-Cp0 // 2), 128)
            Cp = _round_up(C, block_n)
        elif _round_up(N, sub) >= 2 * sub:
            block_m = _round_up(-(-_round_up(N, sub) // 2), sub)
            Np = _round_up(N, block_m)
        grid_m, grid_n = Np // block_m, Cp // block_n

    # --- host-side (one-time) prep ------------------------------------------------
    # In real use the bf16 cast / pad / transpose of the static head weight is done
    # once outside the hot path; zero-width pads are skipped.
    scale = jnp.exp(jnp.asarray(logit_scale, jnp.float32))

    x32 = x.astype(jnp.float32)
    inv_norm = scale / jnp.maximum(
        jnp.sqrt(jnp.sum(x32 * x32, axis=1, keepdims=True)), 1e-12)  # (N, 1) f32
    row_scale = inv_norm if Np == N else jnp.pad(inv_norm, ((0, Np - N), (0, 0)))

    xp = x.astype(compute_dtype)
    if (Np, Dp) != (N, D):
        xp = jnp.pad(xp, ((0, Np - N), (0, Dp - D)))
    wt = weight.astype(compute_dtype).T                              # (D, C)
    if (Dp, Cp) != (D, C):
        wt = jnp.pad(wt, ((0, Dp - D), (0, Cp - C)))
    bp = (bias.astype(jnp.float32) * scale).reshape(1, C)
    if Cp != C:
        bp = jnp.pad(bp, ((0, 0), (0, Cp - C)))

    ws = (2 * block_m * Dp * cd_bytes + 2 * Dp * block_n * cd_bytes
          + 2 * block_m * block_n * out_bytes + 2 * block_m * 128 * 4
          + 2 * 8 * block_n * 4)
    vmem_limit = int(min(56 * 1024 * 1024,
                         max(32 * 1024 * 1024, ws + 4 * 1024 * 1024)))

    cost = pl.CostEstimate(
        flops=2 * Np * Cp * Dp,
        transcendentals=0,
        bytes_accessed=int(Np * Dp * cd_bytes + grid_m * Dp * Cp * cd_bytes
                           + Np * Cp * out_bytes + Np * 4 + Cp * 4))

    out = pl.pallas_call(
        _logit_head_kernel,
        out_shape=jax.ShapeDtypeStruct((Np, Cp), out_dtype),
        grid_spec=pltpu.PrefetchScalarGridSpec(
            num_scalar_prefetch=0,
            grid=(grid_m, grid_n),        # rows outer, classes inner: x block resident
            in_specs=[
                pl.BlockSpec((block_m, Dp), lambda i, j: (i, 0)),   # x (resident over j)
                pl.BlockSpec((Dp, block_n), lambda i, j: (0, j)),   # weight (streamed)
                pl.BlockSpec((block_m, 1), lambda i, j: (i, 0)),    # per-row scale
                pl.BlockSpec((1, block_n), lambda i, j: (0, j)),    # pre-scaled bias
            ],
            out_specs=pl.BlockSpec((block_m, block_n), lambda i, j: (i, j)),
        ),
        compiler_params=pltpu.CompilerParams(
            dimension_semantics=("parallel", "parallel"),
            vmem_limit_bytes=vmem_limit),
        cost_estimate=cost,
    )(xp, wt, row_scale, bp)

    if (Np, Cp) != (N, C):
        out = out[:N, :C]
    return out


if __name__ == "__main__":
    # Small deterministic example (shapes deliberately unaligned to exercise padding).
    N, D, C = 8, 32, 16
    logit_scale = float(np.log(1.0 / 0.07))

    key = jax.random.PRNGKey(0)
    kx, kw, kb = jax.random.split(key, 3)
    x = jax.random.normal(kx, (N, D), dtype=jnp.float32)
    weight = jax.random.normal(kw, (C, D), dtype=jnp.float32) * 0.02   # head weight
    bias = jax.random.normal(kb, (C,), dtype=jnp.float32) * 0.01       # head bias

    out = jax.block_until_ready(logit_head(x, weight, bias, logit_scale))

    # Pure-JAX f32 reference (kernel uses bf16 matmul operands, f32 accumulation).
    xn = x / jnp.maximum(jnp.linalg.norm(x, axis=1, keepdims=True), 1e-12)
    ref = (xn @ weight.T + bias) * jnp.exp(jnp.float32(logit_scale))
    np.testing.assert_allclose(np.asarray(out), np.asarray(ref),
                               rtol=2e-2, atol=2e-2)

    print("KERNEL_OK")
</pallas_src>

<mosaic_0001>
module attributes {stable_mosaic.version = 11 : i64} {
  func.func @_logit_head_kernel(%arg0: i32, %arg1: i32, %arg2: memref<16x128xbf16, #tpu.memory_space<vmem>>, %arg3: memref<128x128xbf16, #tpu.memory_space<vmem>>, %arg4: memref<16x1xf32, #tpu.memory_space<vmem>>, %arg5: memref<1x128xf32, #tpu.memory_space<vmem>>, %arg6: memref<16x128xf32, #tpu.memory_space<vmem>>) attributes {dimension_semantics = [#tpu.dimension_semantics<parallel>, #tpu.dimension_semantics<parallel>], iteration_bounds = array<i64: 1, 1>, scalar_prefetch = 0 : i64, scratch_operands = 0 : i64, tpu.core_type = #tpu.core_type<tc>, window_params = [{transform_indices = @transform_0, window_bounds = array<i64: 16, 128>}, {transform_indices = @transform_1, window_bounds = array<i64: 128, 128>}, {transform_indices = @transform_2, window_bounds = array<i64: 16, 1>}, {transform_indices = @transform_3, window_bounds = array<i64: 1, 128>}, {transform_indices = @transform_4, window_bounds = array<i64: 16, 128>}]} {
    %c0 = arith.constant 0 : index
    %c0_0 = arith.constant 0 : index
    %0 = vector.load %arg2[%c0, %c0_0] : memref<16x128xbf16, #tpu.memory_space<vmem>>, vector<16x128xbf16>
    %c0_1 = arith.constant 0 : index
    %c0_2 = arith.constant 0 : index
    %1 = vector.load %arg3[%c0_1, %c0_2] : memref<128x128xbf16, #tpu.memory_space<vmem>>, vector<128x128xbf16>
    %cst = arith.constant dense<0.000000e+00> : vector<16x128xf32>
    %2 = tpu.matmul %0, %1, %cst {dimension_numbers = #tpu.dot_dimension_numbers<[1], [0], [0], [1], [0, 0, 1, 1], [], []>} : vector<16x128xbf16>, vector<128x128xbf16>, vector<16x128xf32> -> vector<16x128xf32>
    %c0_3 = arith.constant 0 : index
    %c0_4 = arith.constant 0 : index
    %3 = vector.load %arg4[%c0_3, %c0_4] : memref<16x1xf32, #tpu.memory_space<vmem>>, vector<16x1xf32>
    %4 = vector.broadcast %3 : vector<16x1xf32> to vector<16x128xf32>
    %5 = arith.mulf %2, %4 : vector<16x128xf32>
    %c0_5 = arith.constant 0 : index
    %c0_6 = arith.constant 0 : index
    %6 = vector.load %arg5[%c0_5, %c0_6] : memref<1x128xf32, #tpu.memory_space<vmem>>, vector<1x128xf32>
    %7 = vector.broadcast %6 : vector<1x128xf32> to vector<16x128xf32>
    %8 = arith.addf %5, %7 : vector<16x128xf32>
    %c0_7 = arith.constant 0 : index
    %c0_8 = arith.constant 0 : index
    %9 = vector.load %arg6[%c0_7, %c0_8] : memref<16x128xf32, #tpu.memory_space<vmem>>, vector<16x128xf32>
    tpu.vector_store %arg6[%c0_7, %c0_8], %8 {strides = array<i32>} : memref<16x128xf32, #tpu.memory_space<vmem>>, vector<16x128xf32>,
    return
  }
  func.func @transform_0(%arg0: i32, %arg1: i32) -> (i32, i32) {
    %c0_i32 = arith.constant 0 : i32
    %c0_i32_0 = arith.constant 0 : i32
    return %arg0, %c0_i32 : i32, i32
  }
  func.func @transform_1(%arg0: i32, %arg1: i32) -> (i32, i32) {
    %c0_i32 = arith.constant 0 : i32
    %c0_i32_0 = arith.constant 0 : i32
    return %c0_i32, %arg1 : i32, i32
  }
  func.func @transform_2(%arg0: i32, %arg1: i32) -> (i32, i32) {
    %c0_i32 = arith.constant 0 : i32
    %c0_i32_0 = arith.constant 0 : i32
    return %arg0, %c0_i32 : i32, i32
  }
  func.func @transform_3(%arg0: i32, %arg1: i32) -> (i32, i32) {
    %c0_i32 = arith.constant 0 : i32
    %c0_i32_0 = arith.constant 0 : i32
    return %c0_i32, %arg1 : i32, i32
  }
  func.func @transform_4(%arg0: i32, %arg1: i32) -> (i32, i32) {
    %c0_i32 = arith.constant 0 : i32
    return %arg0, %arg1 : i32, i32
  }
}

</mosaic_0001>

<llo_original>
// kernel: tpu_custom_call.1
$region0: #{tpu_custom_call.1}
  #allocation0 [shape = 'u32[]', space=smem, size = 0x4, offset = 0x4, fixed_abs, tag = 'smem constant byte address 0x4 - core index']
  #allocation1 [shape = 'u32[144,128]{1,0:T(1,128)}', space=vmem, size = 0x12000, scoped, tag = 'internal scratch']
  %s0 = inlined_call_operand.vmem [shape: bf16[16,128], index: 0, kind: input, shape index: {}]
  %s1 = inlined_call_operand.hbm [shape: bf16[128,128], index: 1, kind: input, shape index: {}]
  %s2 = inlined_call_operand.vmem [shape: f32[16,1], index: 2, kind: input, shape index: {}]
  %s3 = inlined_call_operand.vmem [shape: f32[1,128], index: 3, kind: input, shape index: {}]
  %s4 = inlined_call_operand.hbm [shape: f32[16,128], index: 4, kind: output, shape index: {}]
  %s5 = sld [smem:[#allocation0]]
  $region30: #{tpu_custom_call.1} parent=0
    _
  %s7 = ssub.s32 1, %s5
  %s8 = scalar_select 0, %s7, %s5
  $region1: #{tpu_custom_call.1} parent=0
    #allocation2 [shape = 'u8[32768]{0}', space=vmem, size = 0x8000, scoped, tag = 'input window, operand 1, single buffered']
    #allocation3 [shape = 's32[1]{0}', space=sflag, size = 0x4, scoped, tag = 'scoped memory for tpu_custom_call.1']
    #allocation4 [shape = 's32[1]{0}', space=sflag, size = 0x4, scoped, tag = 'scoped memory for tpu_custom_call.1']
    #allocation5 [shape = 'u8[8192]{0}', space=vmem, size = 0x2000, scoped, tag = 'output window, operand 0, single buffered']
    %9 = vsyncpa [#allocation3], 0
    %10 = vsyncpa [#allocation4], 0
    // Predicated region
    $region2: #{tpu_custom_call.1} parent=1 // pred_check
      _
    $region3: #{tpu_custom_call.1} parent=1 // pred_check_branch
      %12 = sbr.rel (0) target = $region5
    $region4: #{tpu_custom_call.1} parent=1 // pred_region
      _
    $region5: #{tpu_custom_call.1} parent=1 // pred_fallthru
      _
    // Predicated region
    $region6: #{tpu_custom_call.1} parent=1 // pred_check
      _
    $region7: #{tpu_custom_call.1} parent=1 // pred_check_branch
      %14 = sbr.rel (0) target = $region9
    $region8: #{tpu_custom_call.1} parent=1 // pred_region
      %s16 = ssub.s32 1024, 1024
      %17 = vsyncadd [#allocation3], %s16
      %s18 = sshll.u32 [#allocation2], 4
      %s19 = int_to_ptr.vmem [resolvable:$true] %s18
      %24 = dma.hbm_to_vmem [thread:$0]  %s1, 1024, %s19, [#allocation3], 64, 64, 4
    $region9: #{tpu_custom_call.1} parent=1 // pred_fallthru
      _
    // Predicated region
    $region10: #{tpu_custom_call.1} parent=1 // pred_check
      _
    $region11: #{tpu_custom_call.1} parent=1 // pred_check_branch
      %26 = sbr.rel (0) target = $region13
    $region12: #{tpu_custom_call.1} parent=1 // pred_region
      _
    $region13: #{tpu_custom_call.1} parent=1 // pred_fallthru
      _
    // Predicated region
    $region14: #{tpu_custom_call.1} parent=1 // pred_check
      _
    $region15: #{tpu_custom_call.1} parent=1 // pred_check_branch
      %28 = sbr.rel (0) target = $region17
    $region16: #{tpu_custom_call.1} parent=1 // pred_region
      _
    $region17: #{tpu_custom_call.1} parent=1 // pred_fallthru
      _
    // Predicated region
    $region18: #{tpu_custom_call.1} parent=1 // pred_check
      _
    $region19: #{tpu_custom_call.1} parent=1 // pred_check_branch
      %30 = sbr.rel (0) target = $region21
    $region20: #{tpu_custom_call.1} parent=1 // pred_region
      %31 = dma.done [#allocation3], 1024
    $region21: #{tpu_custom_call.1} parent=1 // pred_fallthru
      _
    %v33 = vld [vmem:[%s0] sm:$0xf]
    %v34 = vld [vmem:[%s0 + $0x4] sm:$0xf]
    %v35 = vld [vmem:[#allocation2] sm:$0xf]
    %v36 = vld [vmem:[#allocation2 + $0x4] sm:$0xf]
    %v37 = vld [vmem:[#allocation2 + $0x8] sm:$0xf]
    %v38 = vld [vmem:[#allocation2 + $0xc] sm:$0xf]
    %v39 = vld [vmem:[#allocation2 + $0x10] sm:$0xf]
    %v40 = vld [vmem:[#allocation2 + $0x14] sm:$0xf]
    %v41 = vld [vmem:[#allocation2 + $0x18] sm:$0xf]
    %v42 = vld [vmem:[#allocation2 + $0x1c] sm:$0xf]
    %v43 = vld [vmem:[#allocation2 + $0x20] sm:$0xf]
    %v44 = vld [vmem:[#allocation2 + $0x24] sm:$0xf]
    %v45 = vld [vmem:[#allocation2 + $0x28] sm:$0xf]
    %v46 = vld [vmem:[#allocation2 + $0x2c] sm:$0xf]
    %v47 = vld [vmem:[#allocation2 + $0x30] sm:$0xf]
    %v48 = vld [vmem:[#allocation2 + $0x34] sm:$0xf]
    %v49 = vld [vmem:[#allocation2 + $0x38] sm:$0xf]
    %v50 = vld [vmem:[#allocation2 + $0x3c] sm:$0xf]
    %v53 = vunpack.c.l.b16 %v33
    %v54 = vunpack.c.l.b16 %v34
    %v55 = vpack.c.b16 %v54, %v53
    %v73 = vunpack.c.l.b16 %v35
    %v74 = vunpack.c.l.b16 %v36
    %v75 = vunpack.c.l.b16 %v37
    %v76 = vunpack.c.l.b16 %v38
    %v77 = vunpack.c.l.b16 %v39
    %v78 = vunpack.c.l.b16 %v40
    %v79 = vunpack.c.l.b16 %v41
    %v80 = vunpack.c.l.b16 %v42
    %v81 = vunpack.c.l.b16 %v43
    %v82 = vunpack.c.l.b16 %v44
    %v83 = vunpack.c.l.b16 %v45
    %v84 = vunpack.c.l.b16 %v46
    %v85 = vunpack.c.l.b16 %v47
    %v86 = vunpack.c.l.b16 %v48
    %v87 = vunpack.c.l.b16 %v49
    %v88 = vunpack.c.l.b16 %v50
    %v89 = vpack.c.b16 %v74, %v73
    %v90 = vpack.c.b16 %v76, %v75
    %v91 = vpack.c.b16 %v78, %v77
    %v92 = vpack.c.b16 %v80, %v79
    %v93 = vpack.c.b16 %v82, %v81
    %v94 = vpack.c.b16 %v84, %v83
    %v95 = vpack.c.b16 %v86, %v85
    %v96 = vpack.c.b16 %v88, %v87
    %105 = vmatprep.subr.bf16.mxu0 0
    %106 = vmatpush1.bf16.msra.mxu0 %v96
    %107 = vmatprep.subr.bf16.mxu0 0
    %108 = vmatpush1.bf16.msra.mxu0 %v95
    %109 = vmatprep.subr.bf16.mxu0 0
    %110 = vmatpush1.bf16.msra.mxu0 %v94
    %111 = vmatprep.subr.bf16.mxu0 0
    %112 = vmatpush1.bf16.msra.mxu0 %v93
    %113 = vmatprep.subr.bf16.mxu0 0
    %114 = vmatpush1.bf16.msra.mxu0 %v92
    %115 = vmatprep.subr.bf16.mxu0 0
    %116 = vmatpush1.bf16.msra.mxu0 %v91
    %117 = vmatprep.subr.bf16.mxu0 0
    %118 = vmatpush1.bf16.msra.mxu0 %v90
    %119 = vmatprep.subr.bf16.mxu0 0
    %120 = vmatpush1.bf16.msra.mxu0 %v89
    %121 = vmatprep.subr.bf16.mxu0 0
    %122 = vmatpush2.bf16.msra.mxu0 0
    %123 = vmatprep.subr.bf16.mxu0 0
    %124 = vmatpush2.bf16.msra.mxu0 0
    %125 = vmatprep.subr.bf16.mxu0 0
    %126 = vmatpush2.bf16.msra.mxu0 0
    %127 = vmatprep.subr.bf16.mxu0 0
    %128 = vmatpush2.bf16.msra.mxu0 0
    %129 = vmatprep.subr.bf16.mxu0 0
    %130 = vmatpush2.bf16.msra.mxu0 0
    %131 = vmatprep.subr.bf16.mxu0 0
    %132 = vmatpush2.bf16.msra.mxu0 0
    %133 = vmatprep.subr.bf16.mxu0 0
    %134 = vmatpush2.bf16.msra.mxu0 0
    %135 = vmatprep.subr.bf16.mxu0 0
    %136 = vmatpush2.bf16.msra.mxu0 0
    %137 = vmatprep.mubr.bf16.mxu0 0
    %138 = vmatmul.mubr.bf16.gmra.mxu0 %v55
    %v139 = vpop.f32.mrf.mxu0
    %v140 = vadd.f32 0.0, %v139
    %v141 = vpop.f32.mrf.mxu0
    %v142 = vpop.f32.mrf.mxu0
    %v143 = vadd.f32 0.0, %v142
    %v144 = vpop.f32.mrf.mxu0
    %145 = vdwg.mxu0
    %v146 = vld [vmem:[%s2] sm:$0xff]
    %v147 = vld [vmem:[%s2 + $0x8] sm:$0xff]
    %149 = vset.pattern.permute.xlu0 0
    %150 = vperm.xlu0 %149, %v146
    %v151 = vpop.permute.xlu0 %150
    %154 = vset.pattern.permute.xlu0 0
    %155 = vperm.xlu0 %154, %v147
    %v156 = vpop.permute.xlu0 %155
    %v158 = vmul.f32 %v140, %v151
    %v159 = vmul.f32 %v143, %v156
    %v160 = vld [vmem:[%s3] sm:$0x1]
    %v162 = vlaneseq
    %v163 = vshrl.u32 %v162, 7
    %v164 = vsub.s32 0, %v163
    %v165 = vrot.slane %v160, %v164
    %v167 = vadd.f32 %v158, %v165
    %v168 = vadd.f32 %v159, %v165
    %169 = vst [vmem:[#allocation5] sm:$0xff] %v167
    %170 = vst [vmem:[#allocation5 + $0x8] sm:$0xff] %v168
    // Predicated region
    $region22: #{tpu_custom_call.1} parent=1 // pred_check
      _
    $region23: #{tpu_custom_call.1} parent=1 // pred_check_branch
      %172 = sbr.rel (0) target = $region25
    $region24: #{tpu_custom_call.1} parent=1 // pred_region
      %s174 = ssub.s32 256, 256
      %175 = vsyncadd [#allocation4], %s174
      %s176 = sshll.u32 [#allocation5], 4
      %s177 = int_to_ptr.vmem [resolvable:$true] %s176
      %182 = dma.vmem_to_hbm [thread:$0]  %s177, 256, %s4, [#allocation4], 128, 128, 8
    $region25: #{tpu_custom_call.1} parent=1 // pred_fallthru
      _
    // Predicated region
    $region26: #{tpu_custom_call.1} parent=1 // pred_check
      _
    $region27: #{tpu_custom_call.1} parent=1 // pred_check_branch
      %184 = sbr.rel (0) target = $region29
    $region28: #{tpu_custom_call.1} parent=1 // pred_region
      %185 = dma.done [#allocation4], 256
    $region29: #{tpu_custom_call.1} parent=1 // pred_fallthru
      _
    %186 = vsyncpa [#allocation3], 1
    %187 = vsyncpa [#allocation4], 1

</llo_original>
